<compile_context>
chip_gen: v7x
topology: tpu7x:2x2x1
jax: 0.10.0
libtpu: 0.0.40
codegen_flags: <defaults>
</compile_context>

<pallas_src>
import jax
import jax.numpy as jnp
from jax.experimental import pallas as pl
from jax.experimental.pallas import tpu as pltpu


# ------------------------------ helpers --------------------------------------


def _round_up(a, b):
    return (a + b - 1) // b * b


def _vmem_capacity_bytes():
    """Per-TensorCore VMEM capacity; conservative fallback if query fails."""
    try:
        cap = int(getattr(pltpu.get_tpu_info(), "vmem_capacity_bytes", 0))
        if cap > 0:
            return cap
    except Exception:
        pass
    return 64 * 1024 * 1024  # v7x per-TC VMEM (smallest current generation)


def _choose_row_tile(M, K, itemsize, vmem_capacity):
    """Pick a row tile: dtype-sublane aligned, VMEM-budgeted, >=8 grid steps."""
    sub = {4: 8, 2: 16, 1: 32}.get(itemsize, 8)
    if M <= sub:
        return M, sub  # whole first dim -> always a legal block
    k_pad = _round_up(K, 128)
    # Keep each x/out block to ~1/12 of VMEM so (2 buffers x (x + out) +
    # resident scale/shift) sits well under the scoped limit on every chip.
    block_budget = max(vmem_capacity // 12, 512 * 1024)
    rows_by_vmem = max(sub, (block_budget // (k_pad * itemsize)) // sub * sub)
    # Aim for >= 8 grid steps so the DMA pipeline can overlap and both v7x
    # TensorCores get several steps each (megacore balance).
    rows_by_steps = max(sub, _round_up(pl.cdiv(M, 8), sub))
    tm = min(rows_by_vmem, rows_by_steps, _round_up(M, sub))
    return tm, sub


# ------------------------------ Pallas kernel --------------------------------


def _make_kernel(resident_affine, tm):
    """Kernel: y = x * scale + shift, per-row scale/shift broadcast over lanes."""

    def kernel(s_ref, b_ref, x_ref, o_ref):
        if resident_affine:
            # Full (M_pad, 1) scale/shift vectors live in VMEM for the whole
            # grid (constant index_map); slice this tile's rows locally.
            off = pl.multiple_of(pl.program_id(0) * tm, tm)
            s = s_ref[pl.ds(off, tm), :]
            b = b_ref[pl.ds(off, tm), :]
        else:
            s = s_ref[...]
            b = b_ref[...]
        x = x_ref[...].astype(jnp.float32)
        o_ref[...] = (x * s + b).astype(o_ref.dtype)

    return kernel


# -------------------------------- wrapper -------------------------------------


_RESIDENT_AFFINE_MAX_BYTES = 4 << 20  # per-vector padded VMEM cap for resident mode


def frozen_batch_norm_2d(x_nchw, weight, bias, running_mean, running_var):
    """FrozenBatchNorm2d forward: x * (w * rsqrt(var)) + (b - mean * w * rsqrt(var))."""
    N, C, H, W = x_nchw.shape
    M, K = N * C, H * W
    itemsize = jnp.dtype(x_nchw.dtype).itemsize

    # Fold the frozen statistics into a per-channel affine (tiny, f32).
    w32 = weight.astype(jnp.float32)
    scale_c = w32 * jax.lax.rsqrt(running_var.astype(jnp.float32))  # no eps (matches torch code)
    shift_c = bias.astype(jnp.float32) - running_mean.astype(jnp.float32) * scale_c

    capacity = _vmem_capacity_bytes()
    tm, sub = _choose_row_tile(M, K, itemsize, capacity)
    grid_m = pl.cdiv(M, tm)
    m_pad = grid_m * tm

    # Per-row scale/shift (row r -> channel r % C), padded to the grid extent
    # so the resident-mode pl.ds slice can never read out of bounds.
    scale_rows = jnp.broadcast_to(scale_c[None, :], (N, C)).reshape(M, 1)
    shift_rows = jnp.broadcast_to(shift_c[None, :], (N, C)).reshape(M, 1)
    if m_pad > M:
        pad = ((0, m_pad - M), (0, 0))
        scale_rows = jnp.pad(scale_rows, pad)
        shift_rows = jnp.pad(shift_rows, pad)

    x2d = x_nchw.reshape(M, K)  # free reshape, no transpose

    # Padded VMEM footprint of one (rows, 1) f32 vector (lanes pad to 128).
    aff_resident_bytes = _round_up(m_pad, 8) * 128 * 4
    resident = aff_resident_bytes <= _RESIDENT_AFFINE_MAX_BYTES

    if resident:
        # DMA'd once, stays resident across all grid steps (constant block index).
        aff_spec = pl.BlockSpec((m_pad, 1), lambda i: (0, 0))
        aff_block_bytes = aff_resident_bytes
    else:
        # Large M: fall back to small per-tile blocks to bound VMEM.
        aff_spec = pl.BlockSpec((tm, 1), lambda i: (i, 0))
        aff_block_bytes = _round_up(tm, 8) * 128 * 4

    # VMEM budget: 2 pipeline buffers x (x block + out block + 2 affine blocks).
    k_pad = _round_up(K, 128)
    xblk_bytes = _round_up(tm, sub) * k_pad * itemsize
    vmem_needed = 2 * (2 * xblk_bytes + 2 * aff_block_bytes) + (2 << 20)
    vmem_limit = int(min(capacity, max(vmem_needed, 32 << 20)))

    kernel = _make_kernel(resident, tm)

    out2d = pl.pallas_call(
        kernel,
        out_shape=jax.ShapeDtypeStruct((M, K), x_nchw.dtype),
        grid=(grid_m,),
        in_specs=[aff_spec,
                  aff_spec,
                  pl.BlockSpec((tm, K), lambda i: (i, 0))],
        out_specs=pl.BlockSpec((tm, K), lambda i: (i, 0)),
        compiler_params=pltpu.CompilerParams(
            dimension_semantics=("parallel",),
            vmem_limit_bytes=vmem_limit),
    )(scale_rows, shift_rows, x2d)

    return out2d.reshape(N, C, H, W)


# --------------------------- pure-JAX reference -------------------------------


def reference_forward(x_nchw, weight, bias, running_mean, running_var):
    scale = weight * jax.lax.rsqrt(running_var)
    shift = bias - running_mean * scale
    return x_nchw * scale.reshape(1, -1, 1, 1) + shift.reshape(1, -1, 1, 1)


# ----------------------------------- main -------------------------------------


if __name__ == "__main__":
    N, C, H, W = 2, 64, 16, 16

    key = jax.random.PRNGKey(0)
    kx, kw, kb, km, kv = jax.random.split(key, 5)
    x = jax.random.normal(kx, (N, C, H, W), jnp.float32)
    weight = jax.random.normal(kw, (C,), jnp.float32)
    bias = jax.random.normal(kb, (C,), jnp.float32)
    running_mean = jax.random.normal(km, (C,), jnp.float32) * 0.1
    running_var = jax.random.uniform(kv, (C,), jnp.float32, minval=0.5, maxval=2.0)

    out = frozen_batch_norm_2d(x, weight, bias, running_mean, running_var)
    out = jax.block_until_ready(out)

    ref = reference_forward(x, weight, bias, running_mean, running_var)
    assert out.shape == ref.shape
    err = float(jnp.max(jnp.abs(out - ref)))
    assert jnp.allclose(out, ref, atol=1e-5, rtol=1e-5), err

    print("KERNEL_OK")
</pallas_src>

<mosaic_0001>
module attributes {stable_mosaic.version = 11 : i64} {
  func.func @kernel(%arg0: i32, %arg1: memref<128x1xf32, #tpu.memory_space<vmem>>, %arg2: memref<128x1xf32, #tpu.memory_space<vmem>>, %arg3: memref<16x256xf32, #tpu.memory_space<vmem>>, %arg4: memref<16x256xf32, #tpu.memory_space<vmem>>) attributes {dimension_semantics = [#tpu.dimension_semantics<parallel>], iteration_bounds = array<i64: 8>, scalar_prefetch = 0 : i64, scratch_operands = 0 : i64, tpu.core_type = #tpu.core_type<tc>, window_params = [{pipeline_mode = #tpu.pipeline_mode<synchronous>, transform_indices = @transform_0, window_bounds = array<i64: 128, 1>}, {pipeline_mode = #tpu.pipeline_mode<synchronous>, transform_indices = @transform_1, window_bounds = array<i64: 128, 1>}, {transform_indices = @transform_2, window_bounds = array<i64: 16, 256>}, {transform_indices = @transform_3, window_bounds = array<i64: 16, 256>}]} {
    %c16_i32 = arith.constant 16 : i32
    %0 = arith.muli %arg0, %c16_i32 : i32
    %1 = tpu.assume_multiple %0, 16 : i32
    %2 = arith.index_cast %1 : i32 to index
    %c0 = arith.constant 0 : index
    %3 = vector.load %arg1[%2, %c0] : memref<128x1xf32, #tpu.memory_space<vmem>>, vector<16x1xf32>
    %4 = arith.index_cast %1 : i32 to index
    %c0_0 = arith.constant 0 : index
    %5 = vector.load %arg2[%4, %c0_0] : memref<128x1xf32, #tpu.memory_space<vmem>>, vector<16x1xf32>
    %c0_1 = arith.constant 0 : index
    %c0_2 = arith.constant 0 : index
    %6 = vector.load %arg3[%c0_1, %c0_2] : memref<16x256xf32, #tpu.memory_space<vmem>>, vector<16x256xf32>
    %7 = vector.broadcast %3 : vector<16x1xf32> to vector<16x256xf32>
    %8 = arith.mulf %6, %7 : vector<16x256xf32>
    %9 = vector.broadcast %5 : vector<16x1xf32> to vector<16x256xf32>
    %10 = arith.addf %8, %9 : vector<16x256xf32>
    %c0_3 = arith.constant 0 : index
    %c0_4 = arith.constant 0 : index
    %11 = vector.load %arg4[%c0_3, %c0_4] : memref<16x256xf32, #tpu.memory_space<vmem>>, vector<16x256xf32>
    tpu.vector_store %arg4[%c0_3, %c0_4], %10 {strides = array<i32>} : memref<16x256xf32, #tpu.memory_space<vmem>>, vector<16x256xf32>,
    return
  }
  func.func @transform_0(%arg0: i32) -> (i32, i32) {
    %c0_i32 = arith.constant 0 : i32
    %c0_i32_0 = arith.constant 0 : i32
    %c0_i32_1 = arith.constant 0 : i32
    return %c0_i32, %c0_i32_0 : i32, i32
  }
  func.func @transform_1(%arg0: i32) -> (i32, i32) {
    %c0_i32 = arith.constant 0 : i32
    %c0_i32_0 = arith.constant 0 : i32
    %c0_i32_1 = arith.constant 0 : i32
    return %c0_i32, %c0_i32_0 : i32, i32
  }
  func.func @transform_2(%arg0: i32) -> (i32, i32) {
    %c0_i32 = arith.constant 0 : i32
    %c0_i32_0 = arith.constant 0 : i32
    return %arg0, %c0_i32 : i32, i32
  }
  func.func @transform_3(%arg0: i32) -> (i32, i32) {
    %c0_i32 = arith.constant 0 : i32
    %c0_i32_0 = arith.constant 0 : i32
    return %arg0, %c0_i32 : i32, i32
  }
}

</mosaic_0001>

<llo_original>
// kernel: tpu_custom_call.1
$region0: #{tpu_custom_call.1}
  #allocation0 [shape = 'u32[]', space=smem, size = 0x4, offset = 0x4, fixed_abs, tag = 'smem constant byte address 0x4 - core index']
  #allocation1 [shape = 'u32[144,128]{1,0:T(1,128)}', space=vmem, size = 0x12000, scoped, tag = 'internal scratch']
  %s0 = inlined_call_operand.vmem [shape: f32[128,1], index: 0, kind: input, shape index: {}]
  %s1 = inlined_call_operand.vmem [shape: f32[128,1], index: 1, kind: input, shape index: {}]
  %s2 = inlined_call_operand.vmem [shape: f32[128,256], index: 2, kind: input, shape index: {}]
  %s3 = inlined_call_operand.hbm [shape: f32[128,256], index: 3, kind: output, shape index: {}]
  %s4 = sld [smem:[#allocation0]]
  $region45: #{tpu_custom_call.1} parent=0
    _
  %s6 = ssub.s32 1, %s4
  %s7 = scalar_select 0, %s6, %s4
  $region1: #{tpu_custom_call.1} parent=0
    #allocation2 [shape = 'u8[32768]{0}', space=vmem, size = 0x8000, scoped, tag = 'output window, operand 0']
    #allocation3 [shape = 's32[2]{0}', space=sflag, size = 0x8, scoped, tag = 'scoped memory for tpu_custom_call.1']
    %8 = vsyncpa [#allocation3], 0
    %s9 = scalar_lea.sflag [#allocation3], 1
    %10 = vsyncpa %s9, 0
    loop: start=0, step=1, limit=10
    $region2: #{tpu_custom_call.1} parent=1 // loop_pre_header
      _
    $region3: #{tpu_custom_call.1} parent=1 // loop_header
      %s12 = sphi 0, %s16
      %p13 = scmp.ge.s32.totalorder %s12, 10
      %s20 = sphi 0, %s20
      %s22 = sphi 0, %s20
      %s23 = sphi 0, %s22
      %s37 = sphi 0, %s23
      %s41 = sphi 0, %s41
      %s43 = sphi 0, %s41
      %s44 = sphi 0, %s43
      %s58 = sphi 0, %s44
      %s64 = sphi 0, %s66
      %s67 = sphi 0, %s64
      %s68 = sphi 0, %s67
      %s84 = sphi 0, %s68
      %s90 = sphi 0, %s92
      %s93 = sphi 0, %s90
      %s94 = sphi 0, %s93
      %s110 = sphi 0, %s94
    $region4: #{tpu_custom_call.1} parent=1 // loop_header_branch
      %15 = sbr.rel (%p13) target = $region8
    $region5: #{tpu_custom_call.1} parent=1 // loop_body
      %s17 = ssub.s32 %s12, 1
      %s18 = ssub.s32 %s12, 2
      %s19 = sadd.s32 %s12, 1
      %s21 = sadd.s32 %s20, 1
      %p24 = scmp.eq.s32.totalorder %s12, 7
      %p25 = scmp.ne.s32.totalorder %s20, %s22
      %p26 = scmp.eq.s32.totalorder %s12, 0
      %p27 = por %p25, %p26
      %p28 = scmp.ne.s32.totalorder %s20, %s22
      %p29 = scmp.eq.s32.totalorder %s17, 7
      %p30 = por %p28, %p29
      %p31 = scmp.ne.s32.totalorder %s22, %s23
      %p32 = scmp.eq.s32.totalorder %s17, 0
      %p33 = por %p31, %p32
      %p34 = scmp.ne.s32.totalorder %s22, %s23
      %p35 = scmp.eq.s32.totalorder %s18, 7
      %p36 = por %p34, %p35
      %p38 = scmp.ne.s32.totalorder %s23, %s37
      %p39 = scmp.eq.s32.totalorder %s18, 0
      %p40 = por %p38, %p39
      %s42 = sadd.s32 %s41, 1
      %p45 = scmp.eq.s32.totalorder %s12, 7
      %p46 = scmp.ne.s32.totalorder %s41, %s43
      %p47 = scmp.eq.s32.totalorder %s12, 0
      %p48 = por %p46, %p47
      %p49 = scmp.ne.s32.totalorder %s41, %s43
      %p50 = scmp.eq.s32.totalorder %s17, 7
      %p51 = por %p49, %p50
      %p52 = scmp.ne.s32.totalorder %s43, %s44
      %p53 = scmp.eq.s32.totalorder %s17, 0
      %p54 = por %p52, %p53
      %p55 = scmp.ne.s32.totalorder %s43, %s44
      %p56 = scmp.eq.s32.totalorder %s18, 7
      %p57 = por %p55, %p56
      %p59 = scmp.ne.s32.totalorder %s44, %s58
      %p60 = scmp.eq.s32.totalorder %s18, 0
      %p61 = por %p59, %p60
      %s62 = ssub.s32 %s12, %s19
      %p63 = scmp.eq.s32.totalorder %s62, 0
      %s65 = sadd.s32 %s64, 1
      %s66 = scalar_select %p63, %s64, %s65
      %p69 = pneg %p63
      %p70 = scmp.eq.s32.totalorder %s12, 7
      %p71 = por %p69, %p70
      %p72 = scmp.ne.s32.totalorder %s64, %s67
      %p73 = scmp.eq.s32.totalorder %s12, 0
      %p74 = por %p72, %p73
      %p75 = scmp.ne.s32.totalorder %s64, %s67
      %p76 = scmp.eq.s32.totalorder %s17, 7
      %p77 = por %p75, %p76
      %p78 = scmp.ne.s32.totalorder %s67, %s68
      %p79 = scmp.eq.s32.totalorder %s17, 0
      %p80 = por %p78, %p79
      %p81 = scmp.ne.s32.totalorder %s67, %s68
      %p82 = scmp.eq.s32.totalorder %s18, 7
      %p83 = por %p81, %p82
      %p85 = scmp.ne.s32.totalorder %s68, %s84
      %p86 = scmp.eq.s32.totalorder %s18, 0
      %p87 = por %p85, %p86
      %s88 = ssub.s32 %s12, %s19
      %p89 = scmp.eq.s32.totalorder %s88, 0
      %s91 = sadd.s32 %s90, 1
      %s92 = scalar_select %p89, %s90, %s91
      %p95 = pneg %p89
      %p96 = scmp.eq.s32.totalorder %s12, 7
      %p97 = por %p95, %p96
      %p98 = scmp.ne.s32.totalorder %s90, %s93
      %p99 = scmp.eq.s32.totalorder %s12, 0
      %p100 = por %p98, %p99
      %p101 = scmp.ne.s32.totalorder %s90, %s93
      %p102 = scmp.eq.s32.totalorder %s17, 7
      %p103 = por %p101, %p102
      %p104 = scmp.ne.s32.totalorder %s93, %s94
      %p105 = scmp.eq.s32.totalorder %s17, 0
      %p106 = por %p104, %p105
      %p107 = scmp.ne.s32.totalorder %s93, %s94
      %p108 = scmp.eq.s32.totalorder %s18, 7
      %p109 = por %p107, %p108
      %p111 = scmp.ne.s32.totalorder %s94, %s110
      %p112 = scmp.eq.s32.totalorder %s18, 0
      %p113 = por %p111, %p112
      %p114 = scmp.le.s32.totalorder 1, %s12
      %p115 = scmp.lt.s32.totalorder %s12, 9
      %p116 = pnand %p114, %p115
      %p117 = pneg %p116
      // Predicated region
      $region9: #{tpu_custom_call.1} parent=5 // pred_check
        _
      $region10: #{tpu_custom_call.1} parent=5 // pred_check_branch
        %119 = sbr.rel (%p116) target = $region12
      $region11: #{tpu_custom_call.1} parent=5 // pred_region
        %s120 = ssub.s32 %s12, 1
        // Predicated region
        $region13: #{tpu_custom_call.1} parent=11 // pred_check
          %p121 = pneg %p33
        $region14: #{tpu_custom_call.1} parent=11 // pred_check_branch
          %123 = sbr.rel (%p121) target = $region16
        $region15: #{tpu_custom_call.1} parent=11 // pred_region
          _
        $region16: #{tpu_custom_call.1} parent=11 // pred_fallthru
          _
        // Predicated region
        $region17: #{tpu_custom_call.1} parent=11 // pred_check
          %p124 = pneg %p54
        $region18: #{tpu_custom_call.1} parent=11 // pred_check_branch
          %126 = sbr.rel (%p124) target = $region20
        $region19: #{tpu_custom_call.1} parent=11 // pred_region
          _
        $region20: #{tpu_custom_call.1} parent=11 // pred_fallthru
          _
      $region12: #{tpu_custom_call.1} parent=5 // pred_fallthru
        _
      %p127 = scmp.lt.s32.totalorder %s12, 8
      // Predicated region
      $region21: #{tpu_custom_call.1} parent=5 // pred_check
        %p128 = pneg %p127
      $region22: #{tpu_custom_call.1} parent=5 // pred_check_branch
        %130 = sbr.rel (%p128) target = $region24
      $region23: #{tpu_custom_call.1} parent=5 // pred_region
        // Predicated region
        $region25: #{tpu_custom_call.1} parent=23 // pred_check
          %p131 = pneg %p74
        $region26: #{tpu_custom_call.1} parent=23 // pred_check_branch
          %133 = sbr.rel (%p131) target = $region28
        $region27: #{tpu_custom_call.1} parent=23 // pred_region
          %s134 = smul.u32 2, %s12
          %p135 = scmp.lt.s32.totalorder %s134, 15
          %s136 = scalar_select %p135, %s134, 15
          %s137 = smul.addr %s136, 2
          %s138 = smul.addr %s137, 8
          %s139 = scalar_lea.vmem %s2, %s138
          %s140 = smul.u32 2, %s12
        $region28: #{tpu_custom_call.1} parent=23 // pred_fallthru
          _
      $region24: #{tpu_custom_call.1} parent=5 // pred_fallthru
        _
      %p141 = scmp.le.s32.totalorder 1, %s12
      %p142 = scmp.lt.s32.totalorder %s12, 9
      %p143 = pnand %p141, %p142
      %p144 = pneg %p143
      // Predicated region
      $region29: #{tpu_custom_call.1} parent=5 // pred_check
        _
      $region30: #{tpu_custom_call.1} parent=5 // pred_check_branch
        %146 = sbr.rel (%p143) target = $region32
      $region31: #{tpu_custom_call.1} parent=5 // pred_region
        %s147 = ssub.s32 %s12, 1
        %p148 = pneg %p33
        %p149 = pneg %p30
        %p150 = pneg %p54
        %p151 = pneg %p51
        %s152 = smul.u32 2, %s17
        %p153 = scmp.lt.s32.totalorder %s152, 15
        %s154 = scalar_select %p153, %s152, 15
        %s155 = smul.addr %s154, 2
        %s156 = smul.addr %s155, 8
        %s157 = scalar_lea.vmem %s2, %s156
        %p158 = pneg %p80
        %p159 = pneg %p77
        %p160 = pneg %p106
        %p161 = pneg %p103
        %s162 = sand.u32 %s93, 1
        %s163 = scalar_lea.sflag [#allocation3], %s162
        %s164 = sand.u32 %s93, 1
        %s165 = smul.addr %s164, 32
        %s166 = scalar_lea.vmem [#allocation2], %s165
        %s167 = smul.u32 2, %s17
        %p168 = scmp.lt.s32.totalorder %s167, 15
        %s169 = scalar_select %p168, %s167, 15
        %s170 = smul.addr %s169, 2
        %s171 = smul.addr %s170, 8
        %s172 = scalar_lea.vmem %s2, %s171
        %s173 = smul.u32 2, %s17
        %s174 = smul.u32 2, %s17
        %s175 = smul.u32 %s17, 16
        %s176 = scalar_lea.vmem %s0, %s175
        %v177 = vld [vmem:[%s176] sm:$0xff]
        %v178 = vld [vmem:[%s176 + $0x8] sm:$0xff]
        %s179 = scalar_lea.vmem %s1, %s175
        %v180 = vld [vmem:[%s179] sm:$0xff]
        %v181 = vld [vmem:[%s179 + $0x8] sm:$0xff]
        %v182 = vld [vmem:[%s172] sm:$0xff]
        %v183 = vld [vmem:[%s172 + $0x8] sm:$0xff]
        %v184 = vld [vmem:[%s172 + $0x10] sm:$0xff]
        %v185 = vld [vmem:[%s172 + $0x18] sm:$0xff]
        %187 = vset.pattern.permute.xlu0 0
        %188 = vperm.xlu0 %187, %v177
        %v189 = vpop.permute.xlu0 %188
        %192 = vset.pattern.permute.xlu0 0
        %193 = vperm.xlu0 %192, %v178
        %v194 = vpop.permute.xlu0 %193
        %v196 = vmul.f32 %v182, %v189
        %v197 = vmul.f32 %v183, %v189
        %v198 = vmul.f32 %v184, %v194
        %v199 = vmul.f32 %v185, %v194
        %201 = vset.pattern.permute.xlu0 0
        %202 = vperm.xlu0 %201, %v180
        %v203 = vpop.permute.xlu0 %202
        %206 = vset.pattern.permute.xlu0 0
        %207 = vperm.xlu0 %206, %v181
        %v208 = vpop.permute.xlu0 %207
        %v210 = vadd.f32 %v196, %v203
        %v211 = vadd.f32 %v197, %v203
        %v212 = vadd.f32 %v198, %v208
        %v213 = vadd.f32 %v199, %v208
        %214 = vst [vmem:[%s166] sm:$0xff] %v210
        %215 = vst [vmem:[%s166 + $0x8] sm:$0xff] %v211
        %216 = vst [vmem:[%s166 + $0x10] sm:$0xff] %v212
        %217 = vst [vmem:[%s166 + $0x18] sm:$0xff] %v213
        %s218 = sand.u32 %s93, 1
        %s219 = scalar_lea.sflag [#allocation3], %s218
        %s220 = sand.u32 %s93, 1
        %s221 = smul.addr %s220, 32
        %s222 = scalar_lea.vmem [#allocation2], %s221
        // Predicated region
        $region33: #{tpu_custom_call.1} parent=31 // pred_check
          %p223 = pneg %p103
        $region34: #{tpu_custom_call.1} parent=31 // pred_check_branch
          %225 = sbr.rel (%p223) target = $region36
        $region35: #{tpu_custom_call.1} parent=31 // pred_region
          %s226 = smul.u32 2, %s17
          %s228 = ssub.s32 512, 512
          %229 = vsyncadd %s219, %s228
          %s230 = smul.addr %s226, 2
          %s231 = smul.addr %s230, 128
          %s232 = scalar_lea.hbm %s3, %s231
          %s233 = sshll.u32 %s222, 4
          %s234 = int_to_ptr.vmem [resolvable:$true] %s233
          %239 = dma.vmem_to_hbm [thread:$0]  %s234, 512, %s232, %s219, 256, 256, 16
        $region36: #{tpu_custom_call.1} parent=31 // pred_fallthru
          _
      $region32: #{tpu_custom_call.1} parent=5 // pred_fallthru
        _
      %p240 = scmp.le.s32.totalorder 2, %s12
      // Predicated region
      $region37: #{tpu_custom_call.1} parent=5 // pred_check
        %p241 = pneg %p240
      $region38: #{tpu_custom_call.1} parent=5 // pred_check_branch
        %243 = sbr.rel (%p241) target = $region40
      $region39: #{tpu_custom_call.1} parent=5 // pred_region
        %s244 = ssub.s32 %s12, 2
        // Predicated region
        $region41: #{tpu_custom_call.1} parent=39 // pred_check
          %p245 = pneg %p109
        $region42: #{tpu_custom_call.1} parent=39 // pred_check_branch
          %247 = sbr.rel (%p245) target = $region44
        $region43: #{tpu_custom_call.1} parent=39 // pred_region
          %s248 = sand.u32 %s94, 1
          %s249 = scalar_lea.sflag [#allocation3], %s248
          %s250 = sand.u32 %s94, 1
          %s251 = smul.addr %s250, 32
          %s252 = scalar_lea.vmem [#allocation2], %s251
          %253 = dma.done %s249, 512
        $region44: #{tpu_custom_call.1} parent=39 // pred_fallthru
          _
      $region40: #{tpu_custom_call.1} parent=5 // pred_fallthru
        _
    $region6: #{tpu_custom_call.1} parent=1 // loop_footer
      %s16 = sadd.s32 1, %s12
    $region7: #{tpu_custom_call.1} parent=1 // loop_footer_branch
      %11 = sbr.rel target = $region3
    $region8: #{tpu_custom_call.1} parent=1 // loop_exit
      _
    %254 = vsyncpa [#allocation3], 1
    %s255 = scalar_lea.sflag [#allocation3], 1
    %256 = vsyncpa %s255, 1

</llo_original>
